<compile_context>
chip_gen: v6e
topology: v6e:2x2x1
jax: 0.10.0
libtpu: 0.0.40
codegen_flags: <defaults>
</compile_context>

<pallas_src>
import jax
import jax.numpy as jnp
from jax.experimental import pallas as pl
from jax.experimental.pallas import tpu as pltpu


def _round_up(x, m):
    return ((x + m - 1) // m) * m


def _pick_row_tile(rows, tm_max):
    """Largest multiple of 8 that divides `rows` and is <= tm_max (None if none)."""
    best = None
    t = 8
    while t <= min(rows, tm_max):
        if rows % t == 0:
            best = t
        t += 8
    return best


def _probe_buffered_single():
    """One-time, import-time feature probe: is pipeline_mode=pl.Buffered(1) supported?"""
    try:
        def k(a_ref, b_ref, o_ref):
            o_ref[...] = a_ref[...] + b_ref[...]

        a = jnp.ones((8, 128), jnp.float32)
        b = jnp.ones((16, 128), jnp.float32)
        out = pl.pallas_call(
            k,
            out_shape=jax.ShapeDtypeStruct((16, 128), jnp.float32),
            grid=(2,),
            in_specs=[
                pl.BlockSpec((8, 128), lambda i: (0, 0), pipeline_mode=pl.Buffered(1)),
                pl.BlockSpec((8, 128), lambda i: (i, 0)),
            ],
            out_specs=pl.BlockSpec((8, 128), lambda i: (i, 0)),
        )(a, b)
        jax.block_until_ready(out)
        return bool(jnp.allclose(out, 2.0))
    except Exception:  # version-dependent feature detect only; real call has no fallback
        return False


_BUFFERED_SINGLE_OK = _probe_buffered_single()


def prepare_token_weight(w):
    """One-time weight prep: token_embedder Linear weight (D, V) -> resident (V, D) bf16."""
    return jnp.asarray(w).T.astype(jnp.bfloat16)


def combined_embedding_kernel(x_ref, wt_ref, bias_ref, o_ref):
    # x_ref:    (TM, V) f32/bf16 -- row tile of flattened token vectors
    # wt_ref:   (V, D)  bf16     -- resident token-embedding weight (Linear weight^T)
    # bias_ref: (TM, D) f32      -- positional + fmap additive embeddings for this tile
    # o_ref:    (TM, D) f32
    x = x_ref[...].astype(jnp.bfloat16)   # in-kernel cast: no extra HBM pass for x
    tok = jnp.dot(x, wt_ref[...], preferred_element_type=jnp.float32)
    o_ref[...] = (tok + bias_ref[...]).astype(o_ref.dtype)


def combined_embedding_forward(x, wt_bf16, pos_table, fmap_table, *,
                               positional_encoding=True, fmap_encoding=True, tm_max=256):
    """x: (B, J, K, V); wt_bf16: (V, D) from prepare_token_weight(); tables: (256, D).

    Returns (B, J, K, D) float32, matching the PyTorch 4-D / positional branch.
    Fully jit-able; the pallas_call is rebuilt only per static shape via jit caching.
    """
    B, J, K, V = x.shape
    Vw, D = wt_bf16.shape
    assert Vw == V, (Vw, V)
    if positional_encoding:
        assert J <= pos_table.shape[0], "positional_embedder has only 256 entries"
    if fmap_encoding:
        assert K <= fmap_table.shape[0], "fmap_embedder has only 256 entries"

    Mb = J * K

    # Additive (J*K, D) bias table, shared by every batch element.
    bias = jnp.zeros((J, K, D), jnp.float32)
    if positional_encoding:
        bias = bias + pos_table[:J].astype(jnp.float32)[:, None, :]
    if fmap_encoding:
        bias = bias + fmap_table[:K].astype(jnp.float32)[None, :, :]
    bias2d = bias.reshape(Mb, D)

    w_kwargs = {"pipeline_mode": pl.Buffered(1)} if _BUFFERED_SINGLE_OK else {}

    tm = _pick_row_tile(Mb, tm_max)
    if tm is not None:
        # Preferred path: flatten the batch into the row dimension.  No padding, more
        # and evenly-sized grid steps, and an even leading parallel axis for v7x.
        rows = B * Mb
        G = rows // tm
        R = Mb // tm                                 # bias blocks per batch element
        x_in = x.reshape(rows, V)
        if R == 1:
            bias_spec = pl.BlockSpec((tm, D), lambda g: (0, 0), **w_kwargs)  # resident
            bias_bufs = 1 if _BUFFERED_SINGLE_OK else 2
        else:
            bias_spec = pl.BlockSpec((tm, D), lambda g: (g % R, 0))
            bias_bufs = 2
        grid = (G,)
        in_specs = [
            pl.BlockSpec((tm, V), lambda g: (g, 0)),                  # activation row tile
            pl.BlockSpec((V, D), lambda g: (0, 0), **w_kwargs),       # resident weight
            bias_spec,                                                # additive embeddings
        ]
        out_specs = pl.BlockSpec((tm, D), lambda g: (g, 0))           # lane-dense output
        out_shape = jax.ShapeDtypeStruct((rows, D), jnp.float32)
        dims = ("parallel",)
        tile_rows = tm
    else:
        # Ragged fallback (J*K not a multiple of 8 / no aligned divisor): per-batch row
        # tiles; the partial last block uses Pallas' masked OOB writes -- still no
        # host-side pad/slice copies.
        tile_rows = min(_round_up(tm_max, 8), _round_up(Mb, 8))
        R = pl.cdiv(Mb, tile_rows)
        x_in = x.reshape(B, Mb, V)
        bias_bufs = 2
        grid = (B, R)
        in_specs = [
            pl.BlockSpec((None, tile_rows, V), lambda b, r: (b, r, 0)),
            pl.BlockSpec((V, D), lambda b, r: (0, 0), **w_kwargs),
            pl.BlockSpec((tile_rows, D), lambda b, r: (r, 0)),
        ]
        out_specs = pl.BlockSpec((None, tile_rows, D), lambda b, r: (b, r, 0))
        out_shape = jax.ShapeDtypeStruct((B, Mb, D), jnp.float32)
        dims = ("parallel", "parallel")

    # VMEM plan: resident bf16 weight + double-buffered x / bias / out tiles (+ slack).
    x_itemsize = jnp.dtype(x.dtype).itemsize
    w_bufs = 1 if _BUFFERED_SINGLE_OK else 2
    vmem_need = (w_bufs * V * D * 2
                 + 2 * tile_rows * V * x_itemsize
                 + bias_bufs * tile_rows * D * 4
                 + 2 * tile_rows * D * 4)
    vmem_limit = max(32 << 20, min(int(vmem_need * 1.25) + (2 << 20), 64 << 20))

    cost = pl.CostEstimate(
        flops=2 * B * Mb * V * D,
        transcendentals=0,
        bytes_accessed=(x.size * x_itemsize + V * D * 2
                        + bias2d.size * 4 + B * Mb * D * 4),
    )

    out = pl.pallas_call(
        combined_embedding_kernel,
        out_shape=out_shape,
        grid=grid,
        in_specs=in_specs,
        out_specs=out_specs,
        compiler_params=pltpu.CompilerParams(
            dimension_semantics=dims,
            vmem_limit_bytes=vmem_limit,
        ),
        cost_estimate=cost,
    )(x_in, wt_bf16, bias2d)

    return out.reshape(B, J, K, D)


def combined_embedding_forward_3d(x, wt_bf16, fmap_table, *, fmap_encoding=True, tm_max=256):
    """`position_idx is not None` / positional_encoding=False branch:
    x (B, S, V) -> (B, S, D) = x @ W^T + fmap_embedder(arange(S))."""
    if x.ndim == 4 and x.shape[1] == 1:
        x = x[:, 0]
    B, S, V = x.shape
    D = wt_bf16.shape[1]
    dummy_pos = jnp.zeros((1, D), jnp.float32)   # unused (positional_encoding=False)
    out = combined_embedding_forward(
        x.reshape(B, 1, S, V), wt_bf16, dummy_pos, fmap_table,
        positional_encoding=False, fmap_encoding=fmap_encoding, tm_max=tm_max)
    return out.reshape(B, S, D)


if __name__ == "__main__":
    key = jax.random.PRNGKey(0)
    k_x, k_w, k_p, k_f = jax.random.split(key, 4)

    # Small shapes consistent with the module: batch=2, feature maps J=8, tokens per
    # map K=16, vocab=512 and embedding_dim=256 as lane-aligned stand-ins for 16384/512.
    B, J, K = 2, 8, 16
    V, D = 512, 256

    x = jax.random.normal(k_x, (B, J, K, V), dtype=jnp.float32)
    w = jax.random.normal(k_w, (D, V), dtype=jnp.float32) * (1.0 / V ** 0.5)   # Linear (out, in)
    pos_table = jax.random.normal(k_p, (256, D), dtype=jnp.float32) * 0.02     # nn.Embedding(256, D)
    fmap_table = jax.random.normal(k_f, (256, D), dtype=jnp.float32) * 0.02    # nn.Embedding(256, D)

    wt_bf16 = prepare_token_weight(w)          # one-time transposed bf16 weight

    fwd = jax.jit(combined_embedding_forward)
    out = jax.block_until_ready(fwd(x, wt_bf16, pos_table, fmap_table))

    # Pure-JAX reference of the PyTorch forward (f32, highest precision).
    ref = (jnp.einsum("bjkv,dv->bjkd", x, w, precision=jax.lax.Precision.HIGHEST)
           + pos_table[:J][None, :, None, :]
           + fmap_table[:K][None, None, :, :])

    assert out.shape == (B, J, K, D)
    max_err = float(jnp.max(jnp.abs(out - ref)))
    assert jnp.allclose(out, ref, atol=3e-2, rtol=3e-2), max_err

    print("KERNEL_OK")
</pallas_src>

<mosaic_0001>
module attributes {stable_mosaic.version = 11 : i64} {
  func.func @k(%arg0: i32, %arg1: memref<8x128xf32, #tpu.memory_space<vmem>>, %arg2: memref<8x128xf32, #tpu.memory_space<vmem>>, %arg3: memref<8x128xf32, #tpu.memory_space<vmem>>) attributes {dimension_semantics = [#tpu.dimension_semantics<arbitrary>], iteration_bounds = array<i64: 2>, scalar_prefetch = 0 : i64, scratch_operands = 0 : i64, tpu.core_type = #tpu.core_type<tc>, window_params = [{pipeline_mode = #tpu.pipeline_mode<synchronous>, transform_indices = @transform_0, window_bounds = array<i64: 8, 128>}, {transform_indices = @transform_1, window_bounds = array<i64: 8, 128>}, {transform_indices = @transform_2, window_bounds = array<i64: 8, 128>}]} {
    %c0 = arith.constant 0 : index
    %c0_0 = arith.constant 0 : index
    %0 = vector.load %arg1[%c0, %c0_0] : memref<8x128xf32, #tpu.memory_space<vmem>>, vector<8x128xf32>
    %c0_1 = arith.constant 0 : index
    %c0_2 = arith.constant 0 : index
    %1 = vector.load %arg2[%c0_1, %c0_2] : memref<8x128xf32, #tpu.memory_space<vmem>>, vector<8x128xf32>
    %2 = arith.addf %0, %1 : vector<8x128xf32>
    %c0_3 = arith.constant 0 : index
    %c0_4 = arith.constant 0 : index
    %3 = vector.load %arg3[%c0_3, %c0_4] : memref<8x128xf32, #tpu.memory_space<vmem>>, vector<8x128xf32>
    tpu.vector_store %arg3[%c0_3, %c0_4], %2 {strides = array<i32>} : memref<8x128xf32, #tpu.memory_space<vmem>>, vector<8x128xf32>,
    return
  }
  func.func @transform_0(%arg0: i32) -> (i32, i32) {
    %c0_i32 = arith.constant 0 : i32
    %c0_i32_0 = arith.constant 0 : i32
    %c0_i32_1 = arith.constant 0 : i32
    return %c0_i32, %c0_i32_0 : i32, i32
  }
  func.func @transform_1(%arg0: i32) -> (i32, i32) {
    %c0_i32 = arith.constant 0 : i32
    %c0_i32_0 = arith.constant 0 : i32
    return %arg0, %c0_i32 : i32, i32
  }
  func.func @transform_2(%arg0: i32) -> (i32, i32) {
    %c0_i32 = arith.constant 0 : i32
    %c0_i32_0 = arith.constant 0 : i32
    return %arg0, %c0_i32 : i32, i32
  }
}

module attributes {stable_mosaic.version = 11 : i64} {
  func.func @combined_embedding_kernel(%arg0: i32, %arg1: memref<128x512xf32, #tpu.memory_space<vmem>>, %arg2: memref<512x256xbf16, #tpu.memory_space<vmem>>, %arg3: memref<128x256xf32, #tpu.memory_space<vmem>>, %arg4: memref<128x256xf32, #tpu.memory_space<vmem>>) attributes {dimension_semantics = [#tpu.dimension_semantics<parallel>], iteration_bounds = array<i64: 2>, scalar_prefetch = 0 : i64, scratch_operands = 0 : i64, tpu.core_type = #tpu.core_type<tc>, window_params = [{transform_indices = @transform_0, window_bounds = array<i64: 128, 512>}, {pipeline_mode = #tpu.pipeline_mode<synchronous>, transform_indices = @transform_1, window_bounds = array<i64: 512, 256>}, {pipeline_mode = #tpu.pipeline_mode<synchronous>, transform_indices = @transform_2, window_bounds = array<i64: 128, 256>}, {transform_indices = @transform_3, window_bounds = array<i64: 128, 256>}]} {
    %c0 = arith.constant 0 : index
    %c0_0 = arith.constant 0 : index
    %0 = vector.load %arg1[%c0, %c0_0] : memref<128x512xf32, #tpu.memory_space<vmem>>, vector<128x512xf32>
    %1 = arith.truncf %0 : vector<128x512xf32> to vector<128x512xbf16>
    %c0_1 = arith.constant 0 : index
    %c0_2 = arith.constant 0 : index
    %2 = vector.load %arg2[%c0_1, %c0_2] : memref<512x256xbf16, #tpu.memory_space<vmem>>, vector<512x256xbf16>
    %cst = arith.constant dense<0.000000e+00> : vector<128x256xf32>
    %3 = tpu.matmul %1, %2, %cst {dimension_numbers = #tpu.dot_dimension_numbers<[1], [0], [0], [1], [0, 0, 1, 1], [], []>} : vector<128x512xbf16>, vector<512x256xbf16>, vector<128x256xf32> -> vector<128x256xf32>
    %c0_3 = arith.constant 0 : index
    %c0_4 = arith.constant 0 : index
    %4 = vector.load %arg3[%c0_3, %c0_4] : memref<128x256xf32, #tpu.memory_space<vmem>>, vector<128x256xf32>
    %5 = arith.addf %3, %4 : vector<128x256xf32>
    %c0_5 = arith.constant 0 : index
    %c0_6 = arith.constant 0 : index
    %6 = vector.load %arg4[%c0_5, %c0_6] : memref<128x256xf32, #tpu.memory_space<vmem>>, vector<128x256xf32>
    tpu.vector_store %arg4[%c0_5, %c0_6], %5 {strides = array<i32>} : memref<128x256xf32, #tpu.memory_space<vmem>>, vector<128x256xf32>,
    return
  }
  func.func @transform_0(%arg0: i32) -> (i32, i32) {
    %c0_i32 = arith.constant 0 : i32
    %c0_i32_0 = arith.constant 0 : i32
    return %arg0, %c0_i32 : i32, i32
  }
  func.func @transform_1(%arg0: i32) -> (i32, i32) {
    %c0_i32 = arith.constant 0 : i32
    %c0_i32_0 = arith.constant 0 : i32
    %c0_i32_1 = arith.constant 0 : i32
    return %c0_i32, %c0_i32_0 : i32, i32
  }
  func.func @transform_2(%arg0: i32) -> (i32, i32) {
    %c0_i32 = arith.constant 0 : i32
    %c0_i32_0 = arith.constant 0 : i32
    %c0_i32_1 = arith.constant 0 : i32
    return %c0_i32, %c0_i32_0 : i32, i32
  }
  func.func @transform_3(%arg0: i32) -> (i32, i32) {
    %c0_i32 = arith.constant 0 : i32
    %c0_i32_0 = arith.constant 0 : i32
    return %arg0, %c0_i32 : i32, i32
  }
}

</mosaic_0001>

<llo_original>
// kernel: tpu_custom_call.1
$region0: #{tpu_custom_call.1}
  #allocation0 [shape = 'u32[]', space=smem, size = 0x4, offset = 0x4, fixed_abs, tag = 'smem constant byte address 0x4 - core index']
  #allocation1 [shape = 'u32[144,128]{1,0:T(1,128)}', space=vmem, size = 0x12000, scoped, tag = 'internal scratch']
  %s0 = inlined_call_operand.hbm [shape: f32[8,128], index: 0, kind: input, shape index: {}]
  %s1 = inlined_call_operand.hbm [shape: f32[16,128], index: 1, kind: input, shape index: {}]
  %s2 = inlined_call_operand.hbm [shape: f32[16,128], index: 2, kind: output, shape index: {}]
  %s3 = sld [smem:[#allocation0]]
  $region49: #{tpu_custom_call.1} parent=0
    _
  %s5 = ssub.s32 1, %s3
  %s6 = scalar_select 0, %s5, %s3
  $region1: #{tpu_custom_call.1} parent=0
    #allocation2 [shape = 'u8[4096]{0}', space=vmem, size = 0x1000, scoped, tag = 'input window, operand 0, single buffered']
    #allocation3 [shape = 's32[2]{0}', space=sflag, size = 0x8, scoped, tag = 'scoped memory for tpu_custom_call.1']
    #allocation4 [shape = 's32[2]{0}', space=sflag, size = 0x8, scoped, tag = 'scoped memory for tpu_custom_call.1']
    #allocation5 [shape = 'u8[8192]{0}', space=vmem, size = 0x2000, scoped, tag = 'input window, operand 1']
    #allocation6 [shape = 's32[2]{0}', space=sflag, size = 0x8, scoped, tag = 'scoped memory for tpu_custom_call.1']
    #allocation7 [shape = 'u8[8192]{0}', space=vmem, size = 0x2000, scoped, tag = 'output window, operand 0']
    %7 = vsyncpa [#allocation3], 0
    %8 = vsyncpa [#allocation6], 0
    %s9 = scalar_lea.sflag [#allocation6], 1
    %10 = vsyncpa %s9, 0
    %11 = vsyncpa [#allocation4], 0
    %s12 = scalar_lea.sflag [#allocation4], 1
    %13 = vsyncpa %s12, 0
    loop: start=0, step=1, limit=4
    $region2: #{tpu_custom_call.1} parent=1 // loop_pre_header
      _
    $region3: #{tpu_custom_call.1} parent=1 // loop_header
      %s15 = sphi 0, %s19
      %p16 = scmp.ge.s32.totalorder %s15, 4
      %s23 = sphi 0, %s23
      %s25 = sphi 0, %s23
      %s26 = sphi 0, %s25
      %s40 = sphi 0, %s26
      %s46 = sphi 0, %s48
      %s49 = sphi 0, %s46
      %s50 = sphi 0, %s49
      %s66 = sphi 0, %s50
      %s72 = sphi 0, %s74
      %s75 = sphi 0, %s72
      %s76 = sphi 0, %s75
      %s92 = sphi 0, %s76
    $region4: #{tpu_custom_call.1} parent=1 // loop_header_branch
      %18 = sbr.rel (%p16) target = $region8
    $region5: #{tpu_custom_call.1} parent=1 // loop_body
      %s20 = ssub.s32 %s15, 1
      %s21 = ssub.s32 %s15, 2
      %s22 = sadd.s32 %s15, 1
      %s24 = sadd.s32 %s23, 1
      %p27 = scmp.eq.s32.totalorder %s15, 1
      %p28 = scmp.ne.s32.totalorder %s23, %s25
      %p29 = scmp.eq.s32.totalorder %s15, 0
      %p30 = por %p28, %p29
      %p31 = scmp.ne.s32.totalorder %s23, %s25
      %p32 = scmp.eq.s32.totalorder %s20, 1
      %p33 = por %p31, %p32
      %p34 = scmp.ne.s32.totalorder %s25, %s26
      %p35 = scmp.eq.s32.totalorder %s20, 0
      %p36 = por %p34, %p35
      %p37 = scmp.ne.s32.totalorder %s25, %s26
      %p38 = scmp.eq.s32.totalorder %s21, 1
      %p39 = por %p37, %p38
      %p41 = scmp.ne.s32.totalorder %s26, %s40
      %p42 = scmp.eq.s32.totalorder %s21, 0
      %p43 = por %p41, %p42
      %s44 = ssub.s32 %s15, %s22
      %p45 = scmp.eq.s32.totalorder %s44, 0
      %s47 = sadd.s32 %s46, 1
      %s48 = scalar_select %p45, %s46, %s47
      %p51 = pneg %p45
      %p52 = scmp.eq.s32.totalorder %s15, 1
      %p53 = por %p51, %p52
      %p54 = scmp.ne.s32.totalorder %s46, %s49
      %p55 = scmp.eq.s32.totalorder %s15, 0
      %p56 = por %p54, %p55
      %p57 = scmp.ne.s32.totalorder %s46, %s49
      %p58 = scmp.eq.s32.totalorder %s20, 1
      %p59 = por %p57, %p58
      %p60 = scmp.ne.s32.totalorder %s49, %s50
      %p61 = scmp.eq.s32.totalorder %s20, 0
      %p62 = por %p60, %p61
      %p63 = scmp.ne.s32.totalorder %s49, %s50
      %p64 = scmp.eq.s32.totalorder %s21, 1
      %p65 = por %p63, %p64
      %p67 = scmp.ne.s32.totalorder %s50, %s66
      %p68 = scmp.eq.s32.totalorder %s21, 0
      %p69 = por %p67, %p68
      %s70 = ssub.s32 %s15, %s22
      %p71 = scmp.eq.s32.totalorder %s70, 0
      %s73 = sadd.s32 %s72, 1
      %s74 = scalar_select %p71, %s72, %s73
      %p77 = pneg %p71
      %p78 = scmp.eq.s32.totalorder %s15, 1
      %p79 = por %p77, %p78
      %p80 = scmp.ne.s32.totalorder %s72, %s75
      %p81 = scmp.eq.s32.totalorder %s15, 0
      %p82 = por %p80, %p81
      %p83 = scmp.ne.s32.totalorder %s72, %s75
      %p84 = scmp.eq.s32.totalorder %s20, 1
      %p85 = por %p83, %p84
      %p86 = scmp.ne.s32.totalorder %s75, %s76
      %p87 = scmp.eq.s32.totalorder %s20, 0
      %p88 = por %p86, %p87
      %p89 = scmp.ne.s32.totalorder %s75, %s76
      %p90 = scmp.eq.s32.totalorder %s21, 1
      %p91 = por %p89, %p90
      %p93 = scmp.ne.s32.totalorder %s76, %s92
      %p94 = scmp.eq.s32.totalorder %s21, 0
      %p95 = por %p93, %p94
      %p96 = scmp.le.s32.totalorder 1, %s15
      %p97 = scmp.lt.s32.totalorder %s15, 3
      %p98 = pnand %p96, %p97
      %p99 = pneg %p98
      // Predicated region
      $region9: #{tpu_custom_call.1} parent=5 // pred_check
        _
      $region10: #{tpu_custom_call.1} parent=5 // pred_check_branch
        %101 = sbr.rel (%p98) target = $region12
      $region11: #{tpu_custom_call.1} parent=5 // pred_region
        %s102 = ssub.s32 %s15, 1
        // Predicated region
        $region13: #{tpu_custom_call.1} parent=11 // pred_check
          %p103 = pneg %p36
        $region14: #{tpu_custom_call.1} parent=11 // pred_check_branch
          %105 = sbr.rel (%p103) target = $region16
        $region15: #{tpu_custom_call.1} parent=11 // pred_region
          %s107 = ssub.s32 128, 128
          %108 = vsyncadd [#allocation3], %s107
          %s110 = sshll.u32 [#allocation2], 4
          %s111 = int_to_ptr.vmem [resolvable:$true] %s110
          %113 = dma.hbm_to_vmem [thread:$0]  %s0, 128, %s111, [#allocation3]
        $region16: #{tpu_custom_call.1} parent=11 // pred_fallthru
          _
      $region12: #{tpu_custom_call.1} parent=5 // pred_fallthru
        _
      %p114 = scmp.lt.s32.totalorder %s15, 2
      // Predicated region
      $region17: #{tpu_custom_call.1} parent=5 // pred_check
        %p115 = pneg %p114
      $region18: #{tpu_custom_call.1} parent=5 // pred_check_branch
        %117 = sbr.rel (%p115) target = $region20
      $region19: #{tpu_custom_call.1} parent=5 // pred_region
        // Predicated region
        $region21: #{tpu_custom_call.1} parent=19 // pred_check
          %p118 = pneg %p56
        $region22: #{tpu_custom_call.1} parent=19 // pred_check_branch
          %120 = sbr.rel (%p118) target = $region24
        $region23: #{tpu_custom_call.1} parent=19 // pred_region
          %s121 = sand.u32 %s46, 1
          %s122 = scalar_lea.sflag [#allocation6], %s121
          %s123 = sand.u32 %s46, 1
          %s124 = smul.addr %s123, 8
          %s125 = scalar_lea.vmem [#allocation5], %s124
          %s127 = ssub.s32 128, 128
          %128 = vsyncadd %s122, %s127
          %s129 = smul.addr %s15, 128
          %s130 = scalar_lea.hbm %s1, %s129
          %s132 = sshll.u32 %s125, 4
          %s133 = int_to_ptr.vmem [resolvable:$true] %s132
          %135 = dma.hbm_to_vmem [thread:$0]  %s130, 128, %s133, %s122
        $region24: #{tpu_custom_call.1} parent=19 // pred_fallthru
          _
      $region20: #{tpu_custom_call.1} parent=5 // pred_fallthru
        _
      %p136 = scmp.le.s32.totalorder 1, %s15
      %p137 = scmp.lt.s32.totalorder %s15, 3
      %p138 = pnand %p136, %p137
      %p139 = pneg %p138
      // Predicated region
      $region25: #{tpu_custom_call.1} parent=5 // pred_check
        _
      $region26: #{tpu_custom_call.1} parent=5 // pred_check_branch
        %141 = sbr.rel (%p138) target = $region28
      $region27: #{tpu_custom_call.1} parent=5 // pred_region
        %s142 = ssub.s32 %s15, 1
        // Predicated region
        $region29: #{tpu_custom_call.1} parent=27 // pred_check
          %p143 = pneg %p36
        $region30: #{tpu_custom_call.1} parent=27 // pred_check_branch
          %145 = sbr.rel (%p143) target = $region32
        $region31: #{tpu_custom_call.1} parent=27 // pred_region
          %146 = dma.done [#allocation3], 128
        $region32: #{tpu_custom_call.1} parent=27 // pred_fallthru
          _
        %s147 = sand.u32 %s49, 1
        %s148 = scalar_lea.sflag [#allocation6], %s147
        %s149 = sand.u32 %s49, 1
        %s150 = smul.addr %s149, 8
        %s151 = scalar_lea.vmem [#allocation5], %s150
        // Predicated region
        $region33: #{tpu_custom_call.1} parent=27 // pred_check
          %p152 = pneg %p62
        $region34: #{tpu_custom_call.1} parent=27 // pred_check_branch
          %154 = sbr.rel (%p152) target = $region36
        $region35: #{tpu_custom_call.1} parent=27 // pred_region
          %155 = dma.done %s148, 128
        $region36: #{tpu_custom_call.1} parent=27 // pred_fallthru
          _
        %p156 = pneg %p36
        %p157 = pneg %p33
        %s158 = sand.u32 %s49, 1
        %s159 = scalar_lea.sflag [#allocation6], %s158
        %s160 = sand.u32 %s49, 1
        %s161 = smul.addr %s160, 8
        %s162 = scalar_lea.vmem [#allocation5], %s161
        %p163 = pneg %p62
        %p164 = pneg %p59
        %p165 = pneg %p88
        %p166 = pneg %p85
        %s167 = sand.u32 %s75, 1
        %s168 = scalar_lea.sflag [#allocation4], %s167
        %s169 = sand.u32 %s75, 1
        %s170 = smul.addr %s169, 8
        %s171 = scalar_lea.vmem [#allocation7], %s170
        %v172 = vld [vmem:[#allocation2] sm:$0xff]
        %v173 = vld [vmem:[%s151] sm:$0xff]
        %v174 = vadd.f32 %v172, %v173
        %175 = vst [vmem:[%s171] sm:$0xff] %v174
        %s176 = sand.u32 %s75, 1
        %s177 = scalar_lea.sflag [#allocation4], %s176
        %s178 = sand.u32 %s75, 1
        %s179 = smul.addr %s178, 8
        %s180 = scalar_lea.vmem [#allocation7], %s179
        // Predicated region
        $region37: #{tpu_custom_call.1} parent=27 // pred_check
          %p181 = pneg %p85
        $region38: #{tpu_custom_call.1} parent=27 // pred_check_branch
          %183 = sbr.rel (%p181) target = $region40
        $region39: #{tpu_custom_call.1} parent=27 // pred_region
          %s185 = ssub.s32 128, 128
          %186 = vsyncadd %s177, %s185
          %s187 = smul.addr %s20, 128
          %s188 = scalar_lea.hbm %s2, %s187
          %s190 = sshll.u32 %s180, 4
          %s191 = int_to_ptr.vmem [resolvable:$true] %s190
          %193 = dma.vmem_to_hbm [thread:$0]  %s191, 128, %s188, %s177
        $region40: #{tpu_custom_call.1} parent=27 // pred_fallthru
          _
      $region28: #{tpu_custom_call.1} parent=5 // pred_fallthru
        _
      %p194 = scmp.le.s32.totalorder 2, %s15
      // Predicated region
      $region41: #{tpu_custom_call.1} parent=5 // pred_check
        %p195 = pneg %p194
      $region42: #{tpu_custom_call.1} parent=5 // pred_check_branch
        %197 = sbr.rel (%p195) target = $region44
      $region43: #{tpu_custom_call.1} parent=5 // pred_region
        %s198 = ssub.s32 %s15, 2
        // Predicated region
        $region45: #{tpu_custom_call.1} parent=43 // pred_check
          %p199 = pneg %p91
        $region46: #{tpu_custom_call.1} parent=43 // pred_check_branch
          %201 = sbr.rel (%p199) target = $region48
        $region47: #{tpu_custom_call.1} parent=43 // pred_region
          %s202 = sand.u32 %s76, 1
          %s203 = scalar_lea.sflag [#allocation4], %s202
          %s204 = sand.u32 %s76, 1
          %s205 = smul.addr %s204, 8
          %s206 = scalar_lea.vmem [#allocation7], %s205
          %207 = dma.done %s203, 128
        $region48: #{tpu_custom_call.1} parent=43 // pred_fallthru
          _
      $region44: #{tpu_custom_call.1} parent=5 // pred_fallthru
        _
    $region6: #{tpu_custom_call.1} parent=1 // loop_footer
      %s19 = sadd.s32 1, %s15
    $region7: #{tpu_custom_call.1} parent=1 // loop_footer_branch
      %14 = sbr.rel target = $region3
    $region8: #{tpu_custom_call.1} parent=1 // loop_exit
      _
    %208 = vsyncpa [#allocation3], 1
    %s209 = scalar_lea.sflag [#allocation3], 1
    %210 = vsyncpa %s209, 1
    %211 = vsyncpa [#allocation6], 1
    %s212 = scalar_lea.sflag [#allocation6], 1
    %213 = vsyncpa %s212, 1
    %214 = vsyncpa [#allocation4], 1
    %s215 = scalar_lea.sflag [#allocation4], 1
    %216 = vsyncpa %s215, 1

// kernel: combined_embedding_forward.1
$region0: #{combined_embedding_forward.1}
  #allocation0 [shape = 'u32[]', space=smem, size = 0x4, offset = 0x4, fixed_abs, tag = 'smem constant byte address 0x4 - core index']
  #allocation1 [shape = 'u32[144,128]{1,0:T(1,128)}', space=vmem, size = 0x12000, scoped, tag = 'internal scratch']
  %s0 = inlined_call_operand.hbm [shape: f32[256,512], index: 0, kind: input, shape index: {}]
  %s1 = inlined_call_operand.hbm [shape: bf16[512,256], index: 1, kind: input, shape index: {}]
  %s2 = inlined_call_operand.vmem [shape: f32[128,256], index: 2, kind: input, shape index: {}]
  %s3 = inlined_call_operand.hbm [shape: f32[256,256], index: 3, kind: output, shape index: {}]
  %s4 = sld [smem:[#allocation0]]
  $region53: #{combined_embedding_forward.1} parent=0
    _
  %s6 = ssub.s32 1, %s4
  %s7 = scalar_select 0, %s6, %s4
  $region1: #{combined_embedding_forward.1} parent=0
    #allocation2 [shape = 'u8[524288]{0}', space=vmem, size = 0x80000, scoped, tag = 'input window, operand 0']
    #allocation3 [shape = 's32[2]{0}', space=sflag, size = 0x8, scoped, tag = 'scoped memory for combined_embedding_forward.1']
    #allocation4 [shape = 's32[2]{0}', space=sflag, size = 0x8, scoped, tag = 'scoped memory for combined_embedding_forward.1']
    #allocation5 [shape = 'u8[262144]{0}', space=vmem, size = 0x40000, scoped, tag = 'input window, operand 1, single buffered']
    #allocation6 [shape = 's32[1]{0}', space=sflag, size = 0x4, scoped, tag = 'scoped memory for combined_embedding_forward.1']
    #allocation7 [shape = 'u8[262144]{0}', space=vmem, size = 0x40000, scoped, tag = 'output window, operand 0']
    %8 = vsyncpa [#allocation3], 0
    %s9 = scalar_lea.sflag [#allocation3], 1
    %10 = vsyncpa %s9, 0
    %11 = vsyncpa [#allocation6], 0
    %12 = vsyncpa [#allocation4], 0
    %s13 = scalar_lea.sflag [#allocation4], 1
    %14 = vsyncpa %s13, 0
    loop: start=0, step=1, limit=4
    $region2: #{combined_embedding_forward.1} parent=1 // loop_pre_header
      _
    $region3: #{combined_embedding_forward.1} parent=1 // loop_header
      %s16 = sphi 0, %s20
      %p17 = scmp.ge.s32.totalorder %s16, 4
      %s26 = sphi 0, %s28
      %s29 = sphi 0, %s26
      %s30 = sphi 0, %s29
      %s46 = sphi 0, %s30
      %s50 = sphi 0, %s50
      %s52 = sphi 0, %s50
      %s53 = sphi 0, %s52
      %s67 = sphi 0, %s53
      %s71 = sphi 0, %s71
      %s73 = sphi 0, %s71
      %s74 = sphi 0, %s73
      %s88 = sphi 0, %s74
      %s94 = sphi 0, %s96
      %s97 = sphi 0, %s94
      %s98 = sphi 0, %s97
      %s114 = sphi 0, %s98
    $region4: #{combined_embedding_forward.1} parent=1 // loop_header_branch
      %19 = sbr.rel (%p17) target = $region8
    $region5: #{combined_embedding_forward.1} parent=1 // loop_body
      %s21 = ssub.s32 %s16, 1
      %s22 = ssub.s32 %s16, 2
      %s23 = sadd.s32 %s16, 1
      %s24 = ssub.s32 %s16, %s23
      %p25 = scmp.eq.s32.totalorder %s24, 0
      %s27 = sadd.s32 %s26, 1
      %s28 = scalar_select %p25, %s26, %s27
      %p31 = pneg %p25
      %p32 = scmp.eq.s32.totalorder %s16, 1
      %p33 = por %p31, %p32
      %p34 = scmp.ne.s32.totalorder %s26, %s29
      %p35 = scmp.eq.s32.totalorder %s16, 0
      %p36 = por %p34, %p35
      %p37 = scmp.ne.s32.totalorder %s26, %s29
      %p38 = scmp.eq.s32.totalorder %s21, 1
      %p39 = por %p37, %p38
      %p40 = scmp.ne.s32.totalorder %s29, %s30
      %p41 = scmp.eq.s32.totalorder %s21, 0
      %p42 = por %p40, %p41
      %p43 = scmp.ne.s32.totalorder %s29, %s30
      %p44 = scmp.eq.s32.totalorder %s22, 1
      %p45 = por %p43, %p44
      %p47 = scmp.ne.s32.totalorder %s30, %s46
      %p48 = scmp.eq.s32.totalorder %s22, 0
      %p49 = por %p47, %p48
      %s51 = sadd.s32 %s50, 1
      %p54 = scmp.eq.s32.totalorder %s16, 1
      %p55 = scmp.ne.s32.totalorder %s50, %s52
      %p56 = scmp.eq.s32.totalorder %s16, 0
      %p57 = por %p55, %p56
      %p58 = scmp.ne.s32.totalorder %s50, %s52
      %p59 = scmp.eq.s32.totalorder %s21, 1
      %p60 = por %p58, %p59
      %p61 = scmp.ne.s32.totalorder %s52, %s53
      %p62 = scmp.eq.s32.totalorder %s21, 0
      %p63 = por %p61, %p62
      %p64 = scmp.ne.s32.totalorder %s52, %s53
      %p65 = scmp.eq.s32.totalorder %s22, 1
      %p66 = por %p64, %p65
      %p68 = scmp.ne.s32.totalorder %s53, %s67
      %p69 = scmp.eq.s32.totalorder %s22, 0
      %p70 = por %p68, %p69
      %s72 = sadd.s32 %s71, 1
      %p75 = scmp.eq.s32.totalorder %s16, 1
      %p76 = scmp.ne.s32.totalorder %s71, %s73
      %p77 = scmp.eq.s32.totalorder %s16, 0
      %p78 = por %p76, %p77
      %p79 = scmp.ne.s32.totalorder %s71, %s73
      %p80 = scmp.eq.s32.totalorder %s21, 1
      %p81 = por %p79, %p80
      %p82 = scmp.ne.s32.totalorder %s73, %s74
      %p83 = scmp.eq.s32.totalorder %s21, 0
      %p84 = por %p82, %p83
      %p85 = scmp.ne.s32.totalorder %s73, %s74
      %p86 = scmp.eq.s32.totalorder %s22, 1
      %p87 = por %p85, %p86
      %p89 = scmp.ne.s32.totalorder %s74, %s88
      %p90 = scmp.eq.s32.totalorder %s22, 0
      %p91 = por %p89, %p90
      %s92 = ssub.s32 %s16, %s23
      %p93 = scmp.eq.s32.totalorder %s92, 0
      %s95 = sadd.s32 %s94, 1
      %s96 = scalar_select %p93, %s94, %s95
      %p99 = pneg %p93
      %p100 = scmp.eq.s32.totalorder %s16, 1
      %p101 = por %p99, %p100
      %p102 = scmp.ne.s32.totalorder %s94, %s97
      %p103 = scmp.eq.s32.totalorder %s16, 0
      %p104 = por %p102, %p103
      %p105 = scmp.ne.s32.totalorder %s94, %s97
      %p106 = scmp.eq.s32.totalorder %s21, 1
      %p107 = por %p105, %p106
      %p108 = scmp.ne.s32.totalorder %s97, %s98
      %p109 = scmp.eq.s32.totalorder %s21, 0
      %p110 = por %p108, %p109
      %p111 = scmp.ne.s32.totalorder %s97, %s98
      %p112 = scmp.eq.s32.totalorder %s22, 1
      %p113 = por %p111, %p112
      %p115 = scmp.ne.s32.totalorder %s98, %s114
      %p116 = scmp.eq.s32.totalorder %s22, 0
      %p117 = por %p115, %p116
      %p118 = scmp.le.s32.totalorder 1, %s16
      %p119 = scmp.lt.s32.totalorder %s16, 3
      %p120 = pnand %p118, %p119
      %p121 = pneg %p120
      // Predicated region
      $region9: #{combined_embedding_forward.1} parent=5 // pred_check
        _
      $region10: #{combined_embedding_forward.1} parent=5 // pred_check_branch
        %123 = sbr.rel (%p120) target = $region12
      $region11: #{combined_embedding_forward.1} parent=5 // pred_region
        %s124 = ssub.s32 %s16, 1
        // Predicated region
        $region13: #{combined_embedding_forward.1} parent=11 // pred_check
          %p125 = pneg %p63
        $region14: #{combined_embedding_forward.1} parent=11 // pred_check_branch
          %127 = sbr.rel (%p125) target = $region16
        $region15: #{combined_embedding_forward.1} parent=11 // pred_region
          %s129 = ssub.s32 8192, 8192
          %130 = vsyncadd [#allocation6], %s129
          %s131 = sshll.u32 [#allocation5], 4
          %s132 = int_to_ptr.vmem [resolvable:$true] %s131
          %137 = dma.hbm_to_vmem [thread:$0]  %s1, 8192, %s132, [#allocation6], 128, 128, 8
        $region16: #{combined_embedding_forward.1} parent=11 // pred_fallthru
          _
        // Predicated region
        $region17: #{combined_embedding_forward.1} parent=11 // pred_check
          %p138 = pneg %p84
        $region18: #{combined_embedding_forward.1} parent=11 // pred_check_branch
          %140 = sbr.rel (%p138) target = $region20
        $region19: #{combined_embedding_forward.1} parent=11 // pred_region
          _
        $region20: #{combined_embedding_forward.1} parent=11 // pred_fallthru
          _
      $region12: #{combined_embedding_forward.1} parent=5 // pred_fallthru
        _
      %p141 = scmp.lt.s32.totalorder %s16, 2
      // Predicated region
      $region21: #{combined_embedding_forward.1} parent=5 // pred_check
        %p142 = pneg %p141
      $region22: #{combined_embedding_forward.1} parent=5 // pred_check_branch
        %144 = sbr.rel (%p142) target = $region24
      $region23: #{combined_embedding_forward.1} parent=5 // pred_region
        // Predicated region
        $region25: #{combined_embedding_forward.1} parent=23 // pred_check
          %p145 = pneg %p36
        $region26: #{combined_embedding_forward.1} parent=23 // pred_check_branch
          %147 = sbr.rel (%p145) target = $region28
        $region27: #{combined_embedding_forward.1} parent=23 // pred_region
          %s148 = sand.u32 %s26, 1
          %s149 = scalar_lea.sflag [#allocation3], %s148
          %s150 = sand.u32 %s26, 1
          %s151 = smul.addr %s150, 512
          %s152 = scalar_lea.vmem [#allocation2], %s151
          %s153 = smul.u32 16, %s16
          %s155 = ssub.s32 8192, 8192
          %156 = vsyncadd %s149, %s155
          %s157 = smul.addr %s153, 4
          %s158 = smul.addr %s157, 128
          %s159 = scalar_lea.hbm %s0, %s158
          %s160 = sshll.u32 %s152, 4
          %s161 = int_to_ptr.vmem [resolvable:$true] %s160
          %166 = dma.hbm_to_vmem [thread:$0]  %s159, 8192, %s161, %s149, 512, 512, 32
        $region28: #{combined_embedding_forward.1} parent=23 // pred_fallthru
          _
      $region24: #{combined_embedding_forward.1} parent=5 // pred_fallthru
        _
      %p167 = scmp.le.s32.totalorder 1, %s16
      %p168 = scmp.lt.s32.totalorder %s16, 3
      %p169 = pnand %p167, %p168
      %p170 = pneg %p169
      // Predicated region
      $region29: #{combined_embedding_forward.1} parent=5 // pred_check
        _
      $region30: #{combined_embedding_forward.1} parent=5 // pred_check_branch
        %172 = sbr.rel (%p169) target = $region32
      $region31: #{combined_embedding_forward.1} parent=5 // pred_region
        %s173 = ssub.s32 %s16, 1
        %s174 = sand.u32 %s29, 1
        %s175 = scalar_lea.sflag [#allocation3], %s174
        %s176 = sand.u32 %s29, 1
        %s177 = smul.addr %s176, 512
        %s178 = scalar_lea.vmem [#allocation2], %s177
        // Predicated region
        $region33: #{combined_embedding_forward.1} parent=31 // pred_check
          %p179 = pneg %p42
        $region34: #{combined_embedding_forward.1} parent=31 // pred_check_branch
          %181 = sbr.rel (%p179) target = $region36
        $region35: #{combined_embedding_forward.1} parent=31 // pred_region
          %182 = dma.done %s175, 8192
        $region36: #{combined_embedding_forward.1} parent=31 // pred_fallthru
          _
        // Predicated region
        $region37: #{combined_embedding_forward.1} parent=31 // pred_check
          %p183 = pneg %p63
        $region38: #{combined_embedding_forward.1} parent=31 // pred_check_branch
          %185 = sbr.rel (%p183) target = $region40
        $region39: #{combined_embedding_forward.1} parent=31 // pred_region
          %186 = dma.done [#allocation6], 8192
        $region40: #{combined_embedding_forward.1} parent=31 // pred_fallthru
          _
        %s187 = sand.u32 %s29, 1
        %s188 = scalar_lea.sflag [#allocation3], %s187
        %s189 = sand.u32 %s29, 1
        %s190 = smul.addr %s189, 512
        %s191 = scalar_lea.vmem [#allocation2], %s190
        %p192 = pneg %p42
        %p193 = pneg %p39
        %p194 = pneg %p63
        %p195 = pneg %p60
        %p196 = pneg %p84
        %p197 = pneg %p81
        %p198 = pneg %p110
        %p199 = pneg %p107
        %s200 = sand.u32 %s97, 1
        %s201 = scalar_lea.sflag [#allocation4], %s200
        %s202 = sand.u32 %s97, 1
        %s203 = smul.addr %s202, 256
        %s204 = scalar_lea.vmem [#allocation7], %s203
        %s205 = smul.u32 16, %s21
        %s206 = smul.u32 16, %s21
        %v207 = vld [vmem:[%s178] sm:$0xff]
        %v208 = vld [vmem:[%s178 + $0x8] sm:$0xff]
        %v209 = vld [vmem:[%s178 + $0x10] sm:$0xff]
        %v210 = vld [vmem:[%s178 + $0x18] sm:$0xff]
        %v211 = vld [vmem:[%s178 + $0x20] sm:$0xff]
        %v212 = vld [vmem:[%s178 + $0x28] sm:$0xff]
        %v213 = vld [vmem:[%s178 + $0x30] sm:$0xff]
        %v214 = vld [vmem:[%s178 + $0x38] sm:$0xff]
        %v215 = vld [vmem:[%s178 + $0x40] sm:$0xff]
        %v216 = vld [vmem:[%s178 + $0x48] sm:$0xff]
        %v217 = vld [vmem:[%s178 + $0x50] sm:$0xff]
        %v218 = vld [vmem:[%s178 + $0x58] sm:$0xff]
        %v219 = vld [vmem:[%s178 + $0x60] sm:$0xff]
        %v220 = vld [vmem:[%s178 + $0x68] sm:$0xff]
        %v221 = vld [vmem:[%s178 + $0x70] sm:$0xff]
        %v222 = vld [vmem:[%s178 + $0x78] sm:$0xff]
        %v223 = vld [vmem:[%s178 + $0x80] sm:$0xff]
        %v224 = vld [vmem:[%s178 + $0x88] sm:$0xff]
        %v225 = vld [vmem:[%s178 + $0x90] sm:$0xff]
        %v226 = vld [vmem:[%s178 + $0x98] sm:$0xff]
        %v227 = vld [vmem:[%s178 + $0xa0] sm:$0xff]
        %v228 = vld [vmem:[%s178 + $0xa8] sm:$0xff]
        %v229 = vld [vmem:[%s178 + $0xb0] sm:$0xff]
        %v230 = vld [vmem:[%s178 + $0xb8] sm:$0xff]
        %v231 = vld [vmem:[%s178 + $0xc0] sm:$0xff]
        %v232 = vld [vmem:[%s178 + $0xc8] sm:$0xff]
        %v233 = vld [vmem:[%s178 + $0xd0] sm:$0xff]
        %v234 = vld [vmem:[%s178 + $0xd8] sm:$0xff]
        %v235 = vld [vmem:[%s178 + $0xe0] sm:$0xff]
        %v236 = vld [vmem:[%s178 + $0xe8] sm:$0xff]
        %v237 = vld [vmem:[%s178 + $0xf0] sm:$0xff]
        %v238 = vld [vmem:[%s178 + $0xf8] sm:$0xff]
        %v239 = vld [vmem:[%s178 + $0x100] sm:$0xff]
        %v240 = vld [vmem:[%s178 + $0x108] sm:$0xff]
        %v241 = vld [vmem:[%s178 + $0x110] sm:$0xff]
        %v242 = vld [vmem:[%s178 + $0x118] sm:$0xff]
        %v243 = vld [vmem:[%s178 + $0x120] sm:$0xff]
        %v244 = vld [vmem:[%s178 + $0x128] sm:$0xff]
        %v245 = vld [vmem:[%s178 + $0x130] sm:$0xff]
        %v246 = vld [vmem:[%s178 + $0x138] sm:$0xff]
        %v247 = vld [vmem:[%s178 + $0x140] sm:$0xff]
        %v248 = vld [vmem:[%s178 + $0x148] sm:$0xff]
        %v249 = vld [vmem:[%s178 + $0x150] sm:$0xff]
        %v250 = vld [vmem:[%s178 + $0x158] sm:$0xff]
        %v251 = vld [vmem:[%s178 + $0x160] sm:$0xff]
        %v252 = vld [vmem:[%s178 + $0x168] sm:$0xff]
        %v253 = vld [vmem:[%s178 + $0x170] sm:$0xff]
        %v254 = vld [vmem:[%s178 + $0x178] sm:$0xff]
        %v255 = vld [vmem:[%s178 + $0x180] sm:$0xff]
        %v256 = vld [vmem:[%s178 + $0x188] sm:$0xff]
        %v257 = vld [vmem:[%s178 + $0x190] sm:$0xff]
        %v258 = vld [vmem:[%s178 + $0x198] sm:$0xff]
        %v259 = vld [vmem:[%s178 + $0x1a0] sm:$0xff]
        %v260 = vld [vmem:[%s178 + $0x1a8] sm:$0xff]
        %v261 = vld [vmem:[%s178 + $0x1b0] sm:$0xff]
        %v262 = vld [vmem:[%s178 + $0x1b8] sm:$0xff]
        %v263 = vld [vmem:[%s178 + $0x1c0] sm:$0xff]
        %v264 = vld [vmem:[%s178 + $0x1c8] sm:$0xff]
        %v265 = vld [vmem:[%s178 + $0x1d0] sm:$0xff]
        %v266 = vld [vmem:[%s178 + $0x1d8] sm:$0xff]
        %v267 = vld [vmem:[%s178 + $0x1e0] sm:$0xff]
        %v268 = vld [vmem:[%s178 + $0x1e8] sm:$0xff]
        %v269 = vld [vmem:[%s178 + $0x1f0] sm:$0xff]
        %v270 = vld [vmem:[%s178 + $0x1f8] sm:$0xff]
        %v271 = vpack.c.bf16 %v211, %v207
        %v272 = vpack.c.bf16 %v212, %v208
        %v273 = vpack.c.bf16 %v213, %v209
        %v274 = vpack.c.bf16 %v214, %v210
        %v275 = vpack.c.bf16 %v219, %v215
        %v276 = vpack.c.bf16 %v220, %v216
        %v277 = vpack.c.bf16 %v221, %v217
        %v278 = vpack.c.bf16 %v222, %v218
        %v279 = vpack.c.bf16 %v227, %v223
        %v280 = vpack.c.bf16 %v228, %v224
        %v281 = vpack.c.bf16 %v229, %v225
        %v282 = vpack.c.bf16 %v230, %v226
        %v283 = vpack.c.bf16 %v235, %v231
        %v284 = vpack.c.bf16 %v236, %v232
        %v285 = vpack.c.bf16 %v237, %v233
        %v286 = vpack.c.bf16 %v238, %v234
        %v287 = vpack.c.bf16 %v243, %v239
        %v288 = vpack.c.bf16 %v244, %v240
        %v289 = vpack.c.bf16 %v245, %v241
        %v290 = vpack.c.bf16 %v246, %v242
        %v291 = vpack.c.bf16 %v251, %v247
        %v292 = vpack.c.bf16 %v252, %v248
        %v293 = vpack.c.bf16 %v253, %v249
        %v294 = vpack.c.bf16 %v254, %v250
        %v295 = vpack.c.bf16 %v259, %v255
        %v296 = vpack.c.bf16 %v260, %v256
        %v297 = vpack.c.bf16 %v261, %v257
        %v298 = vpack.c.bf16 %v262, %v258
        %v299 = vpack.c.bf16 %v267, %v263
        %v300 = vpack.c.bf16 %v268, %v264
        %v301 = vpack.c.bf16 %v269, %v265
        %v302 = vpack.c.bf16 %v270, %v266
        %v303 = vld [vmem:[#allocation5] sm:$0xff]
        %v304 = vld [vmem:[#allocation5 + $0x8] sm:$0xff]
        %v305 = vld [vmem:[#allocation5 + $0x10] sm:$0xff]
        %v306 = vld [vmem:[#allocation5 + $0x18] sm:$0xff]
        %v307 = vld [vmem:[#allocation5 + $0x20] sm:$0xff]
        %v308 = vld [vmem:[#allocation5 + $0x28] sm:$0xff]
        %v309 = vld [vmem:[#allocation5 + $0x30] sm:$0xff]
        %v310 = vld [vmem:[#allocation5 + $0x38] sm:$0xff]
        %v311 = vld [vmem:[#allocation5 + $0x40] sm:$0xff]
        %v312 = vld [vmem:[#allocation5 + $0x48] sm:$0xff]
        %v313 = vld [vmem:[#allocation5 + $0x50] sm:$0xff]
        %v314 = vld [vmem:[#allocation5 + $0x58] sm:$0xff]
        %v315 = vld [vmem:[#allocation5 + $0x60] sm:$0xff]
        %v316 = vld [vmem:[#allocation5 + $0x68] sm:$0xff]
        %v317 = vld [vmem:[#allocation5 + $0x70] sm:$0xff]
        %v318 = vld [vmem:[#allocation5 + $0x78] sm:$0xff]
        %v319 = vld [vmem:[#allocation5 + $0x80] sm:$0xff]
        %v320 = vld [vmem:[#allocation5 + $0x88] sm:$0xff]
        %v321 = vld [vmem:[#allocation5 + $0x90] sm:$0xff]
        %v322 = vld [vmem:[#allocation5 + $0x98] sm:$0xff]
        %v323 = vld [vmem:[#allocation5 + $0xa0] sm:$0xff]
        %v324 = vld [vmem:[#allocation5 + $0xa8] sm:$0xff]
        %v325 = vld [vmem:[#allocation5 + $0xb0] sm:$0xff]
        %v326 = vld [vmem:[#allocation5 + $0xb8] sm:$0xff]
        %v327 = vld [vmem:[#allocation5 + $0xc0] sm:$0xff]
        %v328 = vld [vmem:[#allocation5 + $0xc8] sm:$0xff]
        %v329 = vld [vmem:[#allocation5 + $0xd0] sm:$0xff]
        %v330 = vld [vmem:[#allocation5 + $0xd8] sm:$0xff]
        %v331 = vld [vmem:[#allocation5 + $0xe0] sm:$0xff]
        %v332 = vld [vmem:[#allocation5 + $0xe8] sm:$0xff]
        %v333 = vld [vmem:[#allocation5 + $0xf0] sm:$0xff]
        %v334 = vld [vmem:[#allocation5 + $0xf8] sm:$0xff]
        %v335 = vld [vmem:[#allocation5 + $0x100] sm:$0xff]
        %v336 = vld [vmem:[#allocation5 + $0x108] sm:$0xff]
        %v337 = vld [vmem:[#allocation5 + $0x110] sm:$0xff]
        %v338 = vld [vmem:[#allocation5 + $0x118] sm:$0xff]
        %v339 = vld [vmem:[#allocation5 + $0x120] sm:$0xff]
        %v340 = vld [vmem:[#allocation5 + $0x128] sm:$0xff]
        %v341 = vld [vmem:[#allocation5 + $0x130] sm:$0xff]
        %v342 = vld [vmem:[#allocation5 + $0x138] sm:$0xff]
        %v343 = vld [vmem:[#allocation5 + $0x140] sm:$0xff]
        %v344 = vld [vmem:[#allocation5 + $0x148] sm:$0xff]
        %v345 = vld [vmem:[#allocation5 + $0x150] sm:$0xff]
        %v346 = vld [vmem:[#allocation5 + $0x158] sm:$0xff]
        %v347 = vld [vmem:[#allocation5 + $0x160] sm:$0xff]
        %v348 = vld [vmem:[#allocation5 + $0x168] sm:$0xff]
        %v349 = vld [vmem:[#allocation5 + $0x170] sm:$0xff]
        %v350 = vld [vmem:[#allocation5 + $0x178] sm:$0xff]
        %v351 = vld [vmem:[#allocation5 + $0x180] sm:$0xff]
        %v352 = vld [vmem:[#allocation5 + $0x188] sm:$0xff]
        %v353 = vld [vmem:[#allocation5 + $0x190] sm:$0xff]
        %v354 = vld [vmem:[#allocation5 + $0x198] sm:$0xff]
        %v355 = vld [vmem:[#allocation5 + $0x1a0] sm:$0xff]
        %v356 = vld [vmem:[#allocation5 + $0x1a8] sm:$0xff]
        %v357 = vld [vmem:[#allocation5 + $0x1b0] sm:$0xff]
        %v358 = vld [vmem:[#allocation5 + $0x1b8] sm:$0xff]
        %v359 = vld [vmem:[#allocation5 + $0x1c0] sm:$0xff]
        %v360 = vld [vmem:[#allocation5 + $0x1c8] sm:$0xff]
        %v361 = vld [vmem:[#allocation5 + $0x1d0] sm:$0xff]
        %v362 = vld [vmem:[#allocation5 + $0x1d8] sm:$0xff]
        %v363 = vld [vmem:[#allocation5 + $0x1e0] sm:$0xff]
        %v364 = vld [vmem:[#allocation5 + $0x1e8] sm:$0xff]
        %v365 = vld [vmem:[#allocation5 + $0x1f0] sm:$0xff]
        %v366 = vld [vmem:[#allocation5 + $0x1f8] sm:$0xff]
        %v367 = vld [vmem:[%s2] sm:$0xff]
        %v368 = vld [vmem:[%s2 + $0x8] sm:$0xff]
        %v369 = vld [vmem:[%s2 + $0x10] sm:$0xff]
        %v370 = vld [vmem:[%s2 + $0x18] sm:$0xff]
        %v371 = vld [vmem:[%s2 + $0x20] sm:$0xff]
        %v372 = vld [vmem:[%s2 + $0x28] sm:$0xff]
        %v373 = vld [vmem:[%s2 + $0x30] sm:$0xff]
        %v374 = vld [vmem:[%s2 + $0x38] sm:$0xff]
        %v375 = vld [vmem:[%s2 + $0x40] sm:$0xff]
        %v376 = vld [vmem:[%s2 + $0x48] sm:$0xff]
        %v377 = vld [vmem:[%s2 + $0x50] sm:$0xff]
        %v378 = vld [vmem:[%s2 + $0x58] sm:$0xff]
        %v379 = vld [vmem:[%s2 + $0x60] sm:$0xff]
        %v380 = vld [vmem:[%s2 + $0x68] sm:$0xff]
        %v381 = vld [vmem:[%s2 + $0x70] sm:$0xff]
        %v382 = vld [vmem:[%s2 + $0x78] sm:$0xff]
        %v383 = vld [vmem:[%s2 + $0x80] sm:$0xff]
        %v384 = vld [vmem:[%s2 + $0x88] sm:$0xff]
        %v385 = vld [vmem:[%s2 + $0x90] sm:$0xff]
        %v386 = vld [vmem:[%s2 + $0x98] sm:$0xff]
        %v387 = vld [vmem:[%s2 + $0xa0] sm:$0xff]
        %v388 = vld [vmem:[%s2 + $0xa8] sm:$0xff]
        %v389 = vld [vmem:[%s2 + $0xb0] sm:$0xff]
        %v390 = vld [vmem:[%s2 + $0xb8] sm:$0xff]
        %v391 = vld [vmem:[%s2 + $0xc0] sm:$0xff]
        %v392 = vld [vmem:[%s2 + $0xc8] sm:$0xff]
        %v393 = vld [vmem:[%s2 + $0xd0] sm:$0xff]
        %v394 = vld [vmem:[%s2 + $0xd8] sm:$0xff]
        %v395 = vld [vmem:[%s2 + $0xe0] sm:$0xff]
        %v396 = vld [vmem:[%s2 + $0xe8] sm:$0xff]
        %v397 = vld [vmem:[%s2 + $0xf0] sm:$0xff]
        %v398 = vld [vmem:[%s2 + $0xf8] sm:$0xff]
        %v463 = vunpack.c.l.b16 %v303
        %v464 = vunpack.c.h.b16 %v303
        %v465 = vunpack.c.l.b16 %v304
        %v466 = vunpack.c.h.b16 %v304
        %v467 = vunpack.c.l.b16 %v305
        %v468 = vunpack.c.h.b16 %v305
        %v469 = vunpack.c.l.b16 %v306
        %v470 = vunpack.c.h.b16 %v306
        %v471 = vunpack.c.l.b16 %v307
        %v472 = vunpack.c.h.b16 %v307
        %v473 = vunpack.c.l.b16 %v308
        %v474 = vunpack.c.h.b16 %v308
        %v475 = vunpack.c.l.b16 %v309
        %v476 = vunpack.c.h.b16 %v309
        %v477 = vunpack.c.l.b16 %v310
        %v478 = vunpack.c.h.b16 %v310
        %v479 = vunpack.c.l.b16 %v311
        %v480 = vunpack.c.h.b16 %v311
        %v481 = vunpack.c.l.b16 %v312
        %v482 = vunpack.c.h.b16 %v312
        %v483 = vunpack.c.l.b16 %v313
        %v484 = vunpack.c.h.b16 %v313
        %v485 = vunpack.c.l.b16 %v314
        %v486 = vunpack.c.h.b16 %v314
        %v487 = vunpack.c.l.b16 %v315
        %v488 = vunpack.c.h.b16 %v315
        %v489 = vunpack.c.l.b16 %v316
        %v490 = vunpack.c.h.b16 %v316
        %v491 = vunpack.c.l.b16 %v317
        %v492 = vunpack.c.h.b16 %v317
        %v493 = vunpack.c.l.b16 %v318
        %v494 = vunpack.c.h.b16 %v318
        %v495 = vunpack.c.l.b16 %v319
        %v496 = vunpack.c.h.b16 %v319
        %v497 = vunpack.c.l.b16 %v320
        %v498 = vunpack.c.h.b16 %v320
        %v499 = vunpack.c.l.b16 %v321
        %v500 = vunpack.c.h.b16 %v321
        %v501 = vunpack.c.l.b16 %v322
        %v502 = vunpack.c.h.b16 %v322
        %v503 = vunpack.c.l.b16 %v323
        %v504 = vunpack.c.h.b16 %v323
        %v505 = vunpack.c.l.b16 %v324
        %v506 = vunpack.c.h.b16 %v324
        %v507 = vunpack.c.l.b16 %v325
        %v508 = vunpack.c.h.b16 %v325
        %v509 = vunpack.c.l.b16 %v326
        %v510 = vunpack.c.h.b16 %v326
        %v511 = vunpack.c.l.b16 %v327
        %v512 = vunpack.c.h.b16 %v327
        %v513 = vunpack.c.l.b16 %v328
        %v514 = vunpack.c.h.b16 %v328
        %v515 = vunpack.c.l.b16 %v329
        %v516 = vunpack.c.h.b16 %v329
        %v517 = vunpack.c.l.b16 %v330
        %v518 = vunpack.c.h.b16 %v330
        %v519 = vunpack.c.l.b16 %v331
        %v520 = vunpack.c.h.b16 %v331
        %v521 = vunpack.c.l.b16 %v332
        %v522 = vunpack.c.h.b16 %v332
        %v523 = vunpack.c.l.b16 %v333
        %v524 = vunpack.c.h.b16 %v333
        %v525 = vunpack.c.l.b16 %v334
        %v526 = vunpack.c.h.b16 %v334
        %v527 = vunpack.c.l.b16 %v335
        %v528 = vunpack.c.h.b16 %v335
        %v529 = vunpack.c.l.b16 %v336
        %v530 = vunpack.c.h.b16 %v336
        %v531 = vunpack.c.l.b16 %v337
        %v532 = vunpack.c.h.b16 %v337
        %v533 = vunpack.c.l.b16 %v338
        %v534 = vunpack.c.h.b16 %v338
        %v535 = vunpack.c.l.b16 %v339
        %v536 = vunpack.c.h.b16 %v339
        %v537 = vunpack.c.l.b16 %v340
        %v538 = vunpack.c.h.b16 %v340
        %v539 = vunpack.c.l.b16 %v341
        %v540 = vunpack.c.h.b16 %v341
        %v541 = vunpack.c.l.b16 %v342
        %v542 = vunpack.c.h.b16 %v342
        %v543 = vunpack.c.l.b16 %v343
        %v544 = vunpack.c.h.b16 %v343
        %v545 = vunpack.c.l.b16 %v344
        %v546 = vunpack.c.h.b16 %v344
        %v547 = vunpack.c.l.b16 %v345
        %v548 = vunpack.c.h.b16 %v345
        %v549 = vunpack.c.l.b16 %v346
        %v550 = vunpack.c.h.b16 %v346
        %v551 = vunpack.c.l.b16 %v347
        %v552 = vunpack.c.h.b16 %v347
        %v553 = vunpack.c.l.b16 %v348
        %v554 = vunpack.c.h.b16 %v348
        %v555 = vunpack.c.l.b16 %v349
        %v556 = vunpack.c.h.b16 %v349
        %v557 = vunpack.c.l.b16 %v350
        %v558 = vunpack.c.h.b16 %v350
        %v559 = vunpack.c.l.b16 %v351
        %v560 = vunpack.c.h.b16 %v351
        %v561 = vunpack.c.l.b16 %v352
        %v562 = vunpack.c.h.b16 %v352
        %v563 = vunpack.c.l.b16 %v353
        %v564 = vunpack.c.h.b16 %v353
        %v565 = vunpack.c.l.b16 %v354
        %v566 = vunpack.c.h.b16 %v354
        %v567 = vunpack.c.l.b16 %v355
        %v568 = vunpack.c.h.b16 %v355
        %v569 = vunpack.c.l.b16 %v356
        %v570 = vunpack.c.h.b16 %v356
        %v571 = vunpack.c.l.b16 %v357
        %v572 = vunpack.c.h.b16 %v357
        %v573 = vunpack.c.l.b16 %v358
        %v574 = vunpack.c.h.b16 %v358
        %v575 = vunpack.c.l.b16 %v359
        %v576 = vunpack.c.h.b16 %v359
        %v577 = vunpack.c.l.b16 %v360
        %v578 = vunpack.c.h.b16 %v360
        %v579 = vunpack.c.l.b16 %v361
        %v580 = vunpack.c.h.b16 %v361
        %v581 = vunpack.c.l.b16 %v362
        %v582 = vunpack.c.h.b16 %v362
        %v583 = vunpack.c.l.b16 %v363
        %v584 = vunpack.c.h.b16 %v363
        %v585 = vunpack.c.l.b16 %v364
        %v586 = vunpack.c.h.b16 %v364
        %v587 = vunpack.c.l.b16 %v365
        %v588 = vunpack.c.h.b16 %v365
        %v589 = vunpack.c.l.b16 %v366
        %v590 = vunpack.c.h.b16 %v366
        %v591 = vpack.c.b16 %v465, %v463
        %v592 = vpack.c.b16 %v466, %v464
        %v593 = vpack.c.b16 %v469, %v467
        %v594 = vpack.c.b16 %v470, %v468
        %v595 = vpack.c.b16 %v473, %v471
        %v596 = vpack.c.b16 %v474, %v472
        %v597 = vpack.c.b16 %v477, %v475
        %v598 = vpack.c.b16 %v478, %v476
        %v599 = vpack.c.b16 %v481, %v479
        %v600 = vpack.c.b16 %v482, %v480
        %v601 = vpack.c.b16 %v485, %v483
        %v602 = vpack.c.b16 %v486, %v484
        %v603 = vpack.c.b16 %v489, %v487
        %v604 = vpack.c.b16 %v490, %v488
        %v605 = vpack.c.b16 %v493, %v491
        %v606 = vpack.c.b16 %v494, %v492
        %v607 = vpack.c.b16 %v497, %v495
        %v608 = vpack.c.b16 %v498, %v496
        %v609 = vpack.c.b16 %v501, %v499
        %v610 = vpack.c.b16 %v502, %v500
        %v611 = vpack.c.b16 %v505, %v503
        %v612 = vpack.c.b16 %v506, %v504
        %v613 = vpack.c.b16 %v509, %v507
        %v614 = vpack.c.b16 %v510, %v508
        %v615 = vpack.c.b16 %v513, %v511
        %v616 = vpack.c.b16 %v514, %v512
        %v617 = vpack.c.b16 %v517, %v515
        %v618 = vpack.c.b16 %v518, %v516
        %v619 = vpack.c.b16 %v521, %v519
        %v620 = vpack.c.b16 %v522, %v520
        %v621 = vpack.c.b16 %v525, %v523
        %v622 = vpack.c.b16 %v526, %v524
        %v623 = vpack.c.b16 %v529, %v527
        %v624 = vpack.c.b16 %v530, %v528
        %v625 = vpack.c.b16 %v533, %v531
        %v626 = vpack.c.b16 %v534, %v532
        %v627 = vpack.c.b16 %v537, %v535
        %v628 = vpack.c.b16 %v538, %v536
        %v629 = vpack.c.b16 %v541, %v539
        %v630 = vpack.c.b16 %v542, %v540
        %v631 = vpack.c.b16 %v545, %v543
        %v632 = vpack.c.b16 %v546, %v544
        %v633 = vpack.c.b16 %v549, %v547
        %v634 = vpack.c.b16 %v550, %v548
        %v635 = vpack.c.b16 %v553, %v551
        %v636 = vpack.c.b16 %v554, %v552
        %v637 = vpack.c.b16 %v557, %v555
        %v638 = vpack.c.b16 %v558, %v556
        %v639 = vpack.c.b16 %v561, %v559
        %v640 = vpack.c.b16 %v562, %v560
        %v641 = vpack.c.b16 %v565, %v563
        %v642 = vpack.c.b16 %v566, %v564
        %v643 = vpack.c.b16 %v569, %v567
        %v644 = vpack.c.b16 %v570, %v568
        %v645 = vpack.c.b16 %v573, %v571
        %v646 = vpack.c.b16 %v574, %v572
        %v647 = vpack.c.b16 %v577, %v575
        %v648 = vpack.c.b16 %v578, %v576
        %v649 = vpack.c.b16 %v581, %v579
        %v650 = vpack.c.b16 %v582, %v580
        %v651 = vpack.c.b16 %v585, %v583
        %v652 = vpack.c.b16 %v586, %v584
        %v653 = vpack.c.b16 %v589, %v587
        %v654 = vpack.c.b16 %v590, %v588
        %719 = vmatprep.subr.bf16.mxu0 %v606
        %720 = vmatpush1.bf16.msra.mxu0 %v605
        %721 = vmatprep.subr.bf16.mxu0 %v604
        %722 = vmatpush1.bf16.msra.mxu0 %v603
        %723 = vmatprep.subr.bf16.mxu0 %v602
        %724 = vmatpush1.bf16.msra.mxu0 %v601
        %725 = vmatprep.subr.bf16.mxu0 %v600
        %726 = vmatpush1.bf16.msra.mxu0 %v599
        %727 = vmatprep.subr.bf16.mxu0 %v598
        %728 = vmatpush1.bf16.msra.mxu0 %v597
        %729 = vmatprep.subr.bf16.mxu0 %v596
        %730 = vmatpush1.bf16.msra.mxu0 %v595
        %731 = vmatprep.subr.bf16.mxu0 %v594
        %732 = vmatpush1.bf16.msra.mxu0 %v593
        %733 = vmatprep.subr.bf16.mxu0 %v592
        %734 = vmatpush1.bf16.msra.mxu0 %v591
        %735 = vmatprep.subr.bf16.mxu0 %v622
        %736 = vmatpush2.bf16.msra.mxu0 %v621
        %737 = vmatprep.subr.bf16.mxu0 %v620
        %738 = vmatpush2.bf16.msra.mxu0 %v619
        %739 = vmatprep.subr.bf16.mxu0 %v618
        %740 = vmatpush2.bf16.msra.mxu0 %v617
        %741 = vmatprep.subr.bf16.mxu0 %v616
        %742 = vmatpush2.bf16.msra.mxu0 %v615
        %743 = vmatprep.subr.bf16.mxu0 %v614
        %744 = vmatpush2.bf16.msra.mxu0 %v613
        %745 = vmatprep.subr.bf16.mxu0 %v612
        %746 = vmatpush2.bf16.msra.mxu0 %v611
        %747 = vmatprep.subr.bf16.mxu0 %v610
        %748 = vmatpush2.bf16.msra.mxu0 %v609
        %749 = vmatprep.subr.bf16.mxu0 %v608
        %750 = vmatpush2.bf16.msra.mxu0 %v607
        %751 = vmatprep.mubr.bf16.mxu0 %v272
        %752 = vmatmul.mubr.bf16.gmra.mxu0 %v271
        %v753 = vpop.f32.mrf.mxu0
        %v754 = vadd.f32 %v367, %v753
        %v755 = vpop.f32.mrf.mxu0
        %v756 = vadd.f32 %v368, %v755
        %v757 = vpop.f32.mrf.mxu0
        %v758 = vadd.f32 %v369, %v757
        %v759 = vpop.f32.mrf.mxu0
        %v760 = vadd.f32 %v370, %v759
        %761 = vmatprep.mubr.bf16.mxu0 %v276
        %762 = vmatmul.mubr.bf16.gmra.mxu0 %v275
        %v763 = vpop.f32.mrf.mxu0
        %v764 = vadd.f32 %v371, %v763
        %v765 = vpop.f32.mrf.mxu0
        %v766 = vadd.f32 %v372, %v765
        %v767 = vpop.f32.mrf.mxu0
        %v768 = vadd.f32 %v373, %v767
        %v769 = vpop.f32.mrf.mxu0
        %v770 = vadd.f32 %v374, %v769
        %771 = vmatprep.mubr.bf16.mxu0 %v280
        %772 = vmatmul.mubr.bf16.gmra.mxu0 %v279
        %v773 = vpop.f32.mrf.mxu0
        %v774 = vadd.f32 %v375, %v773
        %v775 = vpop.f32.mrf.mxu0
        %v776 = vadd.f32 %v376, %v775
        %v777 = vpop.f32.mrf.mxu0
        %v778 = vadd.f32 %v377, %v777
        %v779 = vpop.f32.mrf.mxu0
        %v780 = vadd.f32 %v378, %v779
        %781 = vmatprep.mubr.bf16.mxu0 %v284
        %782 = vmatmul.mubr.bf16.gmra.mxu0 %v283
        %v783 = vpop.f32.mrf.mxu0
        %v784 = vadd.f32 %v379, %v783
        %v785 = vpop.f32.mrf.mxu0
        %v786 = vadd.f32 %v380, %v785
        %v787 = vpop.f32.mrf.mxu0
        %v788 = vadd.f32 %v381, %v787
        %v789 = vpop.f32.mrf.mxu0
        %v790 = vadd.f32 %v382, %v789
        %791 = vmatprep.mubr.bf16.mxu0 %v288
        %792 = vmatmul.mubr.bf16.gmra.mxu0 %v287
        %v793 = vpop.f32.mrf.mxu0
        %v794 = vadd.f32 %v383, %v793
        %v795 = vpop.f32.mrf.mxu0
        %v796 = vadd.f32 %v384, %v795
        %v797 = vpop.f32.mrf.mxu0
        %v798 = vadd.f32 %v385, %v797
        %v799 = vpop.f32.mrf.mxu0
        %v800 = vadd.f32 %v386, %v799
        %801 = vmatprep.mubr.bf16.mxu0 %v292
        %802 = vmatmul.mubr.bf16.gmra.mxu0 %v291
        %v803 = vpop.f32.mrf.mxu0
        %v804 = vadd.f32 %v387, %v803
        %v805 = vpop.f32.mrf.mxu0
        %v806 = vadd.f32 %v388, %v805
        %v807 = vpop.f32.mrf.mxu0
        %v808 = vadd.f32 %v389, %v807
        %v809 = vpop.f32.mrf.mxu0
        %v810 = vadd.f32 %v390, %v809
        %811 = vmatprep.mubr.bf16.mxu0 %v296
        %812 = vmatmul.mubr.bf16.gmra.mxu0 %v295
        %v813 = vpop.f32.mrf.mxu0
        %v814 = vadd.f32 %v391, %v813
        %v815 = vpop.f32.mrf.mxu0
        %v816 = vadd.f32 %v392, %v815
        %v817 = vpop.f32.mrf.mxu0
        %v818 = vadd.f32 %v393, %v817
        %v819 = vpop.f32.mrf.mxu0
        %v820 = vadd.f32 %v394, %v819
        %821 = vmatprep.mubr.bf16.mxu0 %v300
        %822 = vmatmul.mubr.bf16.gmra.mxu0 %v299
        %v823 = vpop.f32.mrf.mxu0
        %v824 = vadd.f32 %v395, %v823
        %v825 = vpop.f32.mrf.mxu0
        %v826 = vadd.f32 %v396, %v825
        %v827 = vpop.f32.mrf.mxu0
        %v828 = vadd.f32 %v397, %v827
        %v829 = vpop.f32.mrf.mxu0
        %v830 = vadd.f32 %v398, %v829
        %831 = vdwg.mxu0
        %832 = vmatprep.subr.bf16.mxu0 %v638
        %833 = vmatpush1.bf16.msra.mxu0 %v637
        %834 = vmatprep.subr.bf16.mxu0 %v636
        %835 = vmatpush1.bf16.msra.mxu0 %v635
        %836 = vmatprep.subr.bf16.mxu0 %v634
        %837 = vmatpush1.bf16.msra.mxu0 %v633
        %838 = vmatprep.subr.bf16.mxu0 %v632
        %839 = vmatpush1.bf16.msra.mxu0 %v631
        %840 = vmatprep.subr.bf16.mxu0 %v630
        %841 = vmatpush1.bf16.msra.mxu0 %v629
        %842 = vmatprep.subr.bf16.mxu0 %v628
        %843 = vmatpush1.bf16.msra.mxu0 %v627
        %844 = vmatprep.subr.bf16.mxu0 %v626
        %845 = vmatpush1.bf16.msra.mxu0 %v625
        %846 = vmatprep.subr.bf16.mxu0 %v624
        %847 = vmatpush1.bf16.msra.mxu0 %v623
        %848 = vmatprep.subr.bf16.mxu0 %v654
        %849 = vmatpush2.bf16.msra.mxu0 %v653
        %850 = vmatprep.subr.bf16.mxu0 %v652
        %851 = vmatpush2.bf16.msra.mxu0 %v651
        %852 = vmatprep.subr.bf16.mxu0 %v650
        %853 = vmatpush2.bf16.msra.mxu0 %v649
        %854 = vmatprep.subr.bf16.mxu0 %v648
        %855 = vmatpush2.bf16.msra.mxu0 %v647
        %856 = vmatprep.subr.bf16.mxu0 %v646
        %857 = vmatpush2.bf16.msra.mxu0 %v645
        %858 = vmatprep.subr.bf16.mxu0 %v644
        %859 = vmatpush2.bf16.msra.mxu0 %v643
        %860 = vmatprep.subr.bf16.mxu0 %v642
        %861 = vmatpush2.bf16.msra.mxu0 %v641
        %862 = vmatprep.subr.bf16.mxu0 %v640
        %863 = vmatpush2.bf16.msra.mxu0 %v639
        %864 = vmatprep.mubr.bf16.mxu0 %v274
        %865 = vmatmul.mubr.bf16.gmra.mxu0 %v273
        %v866 = vpop.f32.mrf.mxu0
        %v867 = vadd.f32 %v754, %v866
        %v868 = vpop.f32.mrf.mxu0
        %v869 = vadd.f32 %v756, %v868
        %v870 = vpop.f32.mrf.mxu0
        %v871 = vadd.f32 %v758, %v870
        %v872 = vpop.f32.mrf.mxu0
        %v873 = vadd.f32 %v760, %v872
        %874 = vmatprep.mubr.bf16.mxu0 %v278
        %875 = vmatmul.mubr.bf16.gmra.mxu0 %v277
        %v876 = vpop.f32.mrf.mxu0
        %v877 = vadd.f32 %v764, %v876
        %v878 = vpop.f32.mrf.mxu0
        %v879 = vadd.f32 %v766, %v878
        %v880 = vpop.f32.mrf.mxu0
        %v881 = vadd.f32 %v768, %v880
        %v882 = vpop.f32.mrf.mxu0
        %v883 = vadd.f32 %v770, %v882
        %884 = vmatprep.mubr.bf16.mxu0 %v282
        %885 = vmatmul.mubr.bf16.gmra.mxu0 %v281
        %v886 = vpop.f32.mrf.mxu0
        %v887 = vadd.f32 %v774, %v886
        %v888 = vpop.f32.mrf.mxu0
        %v889 = vadd.f32 %v776, %v888
        %v890 = vpop.f32.mrf.mxu0
        %v891 = vadd.f32 %v778, %v890
        %v892 = vpop.f32.mrf.mxu0
        %v893 = vadd.f32 %v780, %v892
        %894 = vmatprep.mubr.bf16.mxu0 %v286
        %895 = vmatmul.mubr.bf16.gmra.mxu0 %v285
        %v896 = vpop.f32.mrf.mxu0
        %v897 = vadd.f32 %v784, %v896
        %v898 = vpop.f32.mrf.mxu0
        %v899 = vadd.f32 %v786, %v898
        %v900 = vpop.f32.mrf.mxu0
        %v901 = vadd.f32 %v788, %v900
        %v902 = vpop.f32.mrf.mxu0
        %v903 = vadd.f32 %v790, %v902
        %904 = vmatprep.mubr.bf16.mxu0 %v290
        %905 = vmatmul.mubr.bf16.gmra.mxu0 %v289
        %v906 = vpop.f32.mrf.mxu0
        %v907 = vadd.f32 %v794, %v906
        %v908 = vpop.f32.mrf.mxu0
        %v909 = vadd.f32 %v796, %v908
        %v910 = vpop.f32.mrf.mxu0
        %v911 = vadd.f32 %v798, %v910
        %v912 = vpop.f32.mrf.mxu0
        %v913 = vadd.f32 %v800, %v912
        %914 = vmatprep.mubr.bf16.mxu0 %v294
        %915 = vmatmul.mubr.bf16.gmra.mxu0 %v293
        %v916 = vpop.f32.mrf.mxu0
        %v917 = vadd.f32 %v804, %v916
        %v918 = vpop.f32.mrf.mxu0
        %v919 = vadd.f32 %v806, %v918
        %v920 = vpop.f32.mrf.mxu0
        %v921 = vadd.f32 %v808, %v920
        %v922 = vpop.f32.mrf.mxu0
        %v923 = vadd.f32 %v810, %v922
        %924 = vmatprep.mubr.bf16.mxu0 %v298
        %925 = vmatmul.mubr.bf16.gmra.mxu0 %v297
        %v926 = vpop.f32.mrf.mxu0
        %v927 = vadd.f32 %v814, %v926
        %v928 = vpop.f32.mrf.mxu0
        %v929 = vadd.f32 %v816, %v928
        %v930 = vpop.f32.mrf.mxu0
        %v931 = vadd.f32 %v818, %v930
        %v932 = vpop.f32.mrf.mxu0
        %v933 = vadd.f32 %v820, %v932
        %934 = vmatprep.mubr.bf16.mxu0 %v302
        %935 = vmatmul.mubr.bf16.gmra.mxu0 %v301
        %v936 = vpop.f32.mrf.mxu0
        %v937 = vadd.f32 %v824, %v936
        %v938 = vpop.f32.mrf.mxu0
        %v939 = vadd.f32 %v826, %v938
        %v940 = vpop.f32.mrf.mxu0
        %v941 = vadd.f32 %v828, %v940
        %v942 = vpop.f32.mrf.mxu0
        %v943 = vadd.f32 %v830, %v942
        %944 = vdwg.mxu0
        %945 = vst [vmem:[%s204] sm:$0xff] %v867
        %946 = vst [vmem:[%s204 + $0x8] sm:$0xff] %v869
        %947 = vst [vmem:[%s204 + $0x10] sm:$0xff] %v871
        %948 = vst [vmem:[%s204 + $0x18] sm:$0xff] %v873
        %949 = vst [vmem:[%s204 + $0x20] sm:$0xff] %v877
        %950 = vst [vmem:[%s204 + $0x28] sm:$0xff] %v879
        %951 = vst [vmem:[%s204 + $0x30] sm:$0xff] %v881
        %952 = vst [vmem:[%s204 + $0x38] sm:$0xff] %v883
        %953 = vst [vmem:[%s204 + $0x40] sm:$0xff] %v887
        %954 = vst [vmem:[%s204 + $0x48] sm:$0xff] %v889
        %955 = vst [vmem:[%s204 + $0x50] sm:$0xff] %v891
        %956 = vst [vmem:[%s204 + $0x58] sm:$0xff] %v893
        %957 = vst [vmem:[%s204 + $0x60] sm:$0xff] %v897
        %958 = vst [vmem:[%s204 + $0x68] sm:$0xff] %v899
        %959 = vst [vmem:[%s204 + $0x70] sm:$0xff] %v901
        %960 = vst [vmem:[%s204 + $0x78] sm:$0xff] %v903
        %961 = vst [vmem:[%s204 + $0x80] sm:$0xff] %v907
        %962 = vst [vmem:[%s204 + $0x88] sm:$0xff] %v909
        %963 = vst [vmem:[%s204 + $0x90] sm:$0xff] %v911
        %964 = vst [vmem:[%s204 + $0x98] sm:$0xff] %v913
        %965 = vst [vmem:[%s204 + $0xa0] sm:$0xff] %v917
        %966 = vst [vmem:[%s204 + $0xa8] sm:$0xff] %v919
        %967 = vst [vmem:[%s204 + $0xb0] sm:$0xff] %v921
        %968 = vst [vmem:[%s204 + $0xb8] sm:$0xff] %v923
        %969 = vst [vmem:[%s204 + $0xc0] sm:$0xff] %v927
        %970 = vst [vmem:[%s204 + $0xc8] sm:$0xff] %v929
        %971 = vst [vmem:[%s204 + $0xd0] sm:$0xff] %v931
        %972 = vst [vmem:[%s204 + $0xd8] sm:$0xff] %v933
        %973 = vst [vmem:[%s204 + $0xe0] sm:$0xff] %v937
        %974 = vst [vmem:[%s204 + $0xe8] sm:$0xff] %v939
        %975 = vst [vmem:[%s204 + $0xf0] sm:$0xff] %v941
        %976 = vst [vmem:[%s204 + $0xf8] sm:$0xff] %v943
        %s977 = sand.u32 %s97, 1
        %s978 = scalar_lea.sflag [#allocation4], %s977
        %s979 = sand.u32 %s97, 1
        %s980 = smul.addr %s979, 256
        %s981 = scalar_lea.vmem [#allocation7], %s980
        // Predicated region
        $region41: #{combined_embedding_forward.1} parent=31 // pred_check
          %p982 = pneg %p107
        $region42: #{combined_embedding_forward.1} parent=31 // pred_check_branch
          %984 = sbr.rel (%p982) target = $region44
        $region43: #{combined_embedding_forward.1} parent=31 // pred_region
          %s985 = smul.u32 16, %s21
          %s987 = ssub.s32 4096, 4096
          %988 = vsyncadd %s978, %s987
          %s989 = smul.addr %s985, 2
          %s990 = smul.addr %s989, 128
          %s991 = scalar_lea.hbm %s3, %s990
          %s992 = sshll.u32 %s981, 4
          %s993 = int_to_ptr.vmem [resolvable:$true] %s992
          %998 = dma.vmem_to_hbm [thread:$0]  %s993, 4096, %s991, %s978, 256, 256, 16
        $region44: #{combined_embedding_forward.1} parent=31 // pred_fallthru
          _
      $region32: #{combined_embedding_forward.1} parent=5 // pred_fallthru
        _
      %p999 = scmp.le.s32.totalorder 2, %s16
      // Predicated region
      $region45: #{combined_embedding_forward.1} parent=5 // pred_check
        %p1000 = pneg %p999
      $region46: #{combined_embedding_forward.1} parent=5 // pred_check_branch
        %1002 = sbr.rel (%p1000) target = $region48
      $region47: #{combined_embedding_forward.1} parent=5 // pred_region
        %s1003 = ssub.s32 %s16, 2
        // Predicated region
        $region49: #{combined_embedding_forward.1} parent=47 // pred_check
          %p1004 = pneg %p113
        $region50: #{combined_embedding_forward.1} parent=47 // pred_check_branch
          %1006 = sbr.rel (%p1004) target = $region52
        $region51: #{combined_embedding_forward.1} parent=47 // pred_region
          %s1007 = sand.u32 %s98, 1
          %s1008 = scalar_lea.sflag [#allocation4], %s1007
          %s1009 = sand.u32 %s98, 1
          %s1010 = smul.addr %s1009, 256
          %s1011 = scalar_lea.vmem [#allocation7], %s1010
          %1012 = dma.done %s1008, 4096
        $region52: #{combined_embedding_forward.1} parent=47 // pred_fallthru
          _
      $region48: #{combined_embedding_forward.1} parent=5 // pred_fallthru
        _
    $region6: #{combined_embedding_forward.1} parent=1 // loop_footer
      %s20 = sadd.s32 1, %s16
    $region7: #{combined_embedding_forward.1} parent=1 // loop_footer_branch
      %15 = sbr.rel target = $region3
    $region8: #{combined_embedding_forward.1} parent=1 // loop_exit
      _
    %1013 = vsyncpa [#allocation3], 1
    %s1014 = scalar_lea.sflag [#allocation3], 1
    %1015 = vsyncpa %s1014, 1
    %1016 = vsyncpa [#allocation6], 1
    %1017 = vsyncpa [#allocation4], 1
    %s1018 = scalar_lea.sflag [#allocation4], 1
    %1019 = vsyncpa %s1018, 1

</llo_original>
